<compile_context>
chip_gen: v6e
topology: v6e:2x2x1
jax: 0.10.0
libtpu: 0.0.40
codegen_flags: <defaults>
</compile_context>

<pallas_src>
import functools

import jax
import jax.numpy as jnp
from jax import lax
from jax.experimental import pallas as pl
from jax.experimental.pallas import tpu as pltpu

_LANE = 128
_SUBLANE = 8


def _round_up(x, m):
    return ((x + m - 1) // m) * m


def _device_tuning(itemsize):
    """Per-generation (block_rows, num_parts, vmem_limit_bytes, native_sub)."""
    kind = ""
    try:
        kind = jax.devices()[0].device_kind.lower()
    except Exception:
        pass
    if "v7" in kind:
        # 4 MiB/input/buffer -> 16 MiB double-buffered for 2 inputs; 2 TCs.
        tile_bytes, parts, vmem_limit = 4 << 20, 2, 32 << 20
    elif "v6" in kind:
        # Single TensorCore; 16 MiB double-buffered fits the 32 MiB scoped default.
        tile_bytes, parts, vmem_limit = 4 << 20, 1, None
    elif "v5" in kind:
        # Keep 2 inputs x 2 buffers (8 MiB) under v5e's 16 MiB scoped default.
        tile_bytes, parts, vmem_limit = 2 << 20, 1, None
    else:
        tile_bytes, parts, vmem_limit = 1 << 20, 1, None
    block_rows = max(_SUBLANE,
                     (tile_bytes // (_LANE * itemsize)) // _SUBLANE * _SUBLANE)
    native_sub = ("v6" in kind) or ("v7" in kind)   # bf16 VALU available
    return block_rows, parts, vmem_limit, native_sub


def _mse_partial_kernel(x_ref, y_ref, o_ref, *, rows, block_rows,
                        inner_blocks, need_mask, native_sub):
    """Accumulate per-part partial sums of (x - y)^2 into an (8,128) block.

    x_ref, y_ref: (block_rows, 128) VMEM tiles (native input dtype).
    o_ref:        (8, 128) f32 block, resident across the inner (reduction)
                  grid axis; one block per outer "part" (TensorCore on v7x).
    """
    c = pl.program_id(0)   # part
    i = pl.program_id(1)   # block within the part (reduction axis)

    @pl.when(i == 0)
    def _():
        o_ref[...] = jnp.zeros_like(o_ref)

    def squared_diff():
        if x_ref.dtype == jnp.float32:
            d = x_ref[...] - y_ref[...]
        elif native_sub:
            # bf16 subtract on the VPU (v6e/v7x), upcast only the difference.
            d = (x_ref[...] - y_ref[...]).astype(jnp.float32)
        else:
            d = x_ref[...].astype(jnp.float32) - y_ref[...].astype(jnp.float32)
        return d * d

    def accumulate(sq):
        # Fold the tile into the vreg-shaped accumulator with pure VPU adds.
        # (Groups whole (8,128) tiles, so the reshape lowers as a view.)
        o_ref[...] += jnp.sum(
            sq.reshape(block_rows // _SUBLANE, _SUBLANE, _LANE), axis=0)

    if not need_mask:
        # Grid exactly covers the array: no mask code emitted at all.
        accumulate(squared_diff())
    else:
        valid = rows - (c * inner_blocks + i) * block_rows   # scalar

        @pl.when(valid >= block_rows)
        def _():
            accumulate(squared_diff())

        @pl.when(jnp.logical_and(valid > 0, valid < block_rows))
        def _():
            sq = squared_diff()
            row_ids = lax.broadcasted_iota(jnp.int32, sq.shape, 0)
            accumulate(jnp.where(row_ids < valid, sq, 0.0))
        # valid <= 0 (clamped duplicate block): skip compute entirely.


def complex_loss(x_complex, y_complex, weight=1.0, block_rows=None):
    """mean((x - y)^2) * 2 * weight, computed in a Pallas TPU kernel."""
    if jnp.iscomplexobj(x_complex):
        # TODO(synk): torch F.mse_loss rejects complex dtypes; we treat complex
        # inputs as real/imag pairs, which makes the result weight*mean(|x-y|^2)
        # (the explicit factor 2 cancels against the doubled element count).
        x_complex = jnp.stack([jnp.real(x_complex), jnp.imag(x_complex)], -1)
        y_complex = jnp.stack([jnp.real(y_complex), jnp.imag(y_complex)], -1)

    n = x_complex.size
    itemsize = x_complex.dtype.itemsize
    xf = x_complex.reshape(-1)          # reshape of contiguous arrays: layout-free
    yf = y_complex.reshape(-1)

    tuned_rows, tuned_parts, vmem_limit, native_sub = _device_tuning(itemsize)
    if block_rows is None:
        block_rows = tuned_rows

    rows = n // _LANE
    rem = n % _LANE
    scale = 2.0 * float(weight) / float(n)

    tail_sq_sum = jnp.float32(0.0)
    if rem:
        # Sub-128 ragged lane tail: sum in plain JAX instead of padding the
        # whole flattened inputs (which would add a full extra HBM pass).
        tx = xf[rows * _LANE:].astype(jnp.float32)
        ty = yf[rows * _LANE:].astype(jnp.float32)
        tail_sq_sum = jnp.sum((tx - ty) ** 2)

    if rows == 0:
        return tail_sq_sum * jnp.float32(scale)

    if rem:
        # TODO(synk): slicing the aligned prefix materializes one copy of each
        # input; NCHW-sized inputs are lane-aligned and never hit this path.
        xf = xf[:rows * _LANE]
        yf = yf[:rows * _LANE]

    x2 = xf.reshape(rows, _LANE)
    y2 = yf.reshape(rows, _LANE)

    block_rows = min(block_rows, _round_up(rows, _SUBLANE))
    block_rows = max(_SUBLANE, (block_rows // _SUBLANE) * _SUBLANE)

    total_blocks = pl.cdiv(rows, block_rows)
    num_parts = tuned_parts if total_blocks > 1 else 1
    inner_blocks = pl.cdiv(total_blocks, num_parts)
    need_mask = (num_parts * inner_blocks * block_rows) != rows

    def in_index_map(c, i):
        # Clamp so the DMA'd block is always in-bounds; the kernel masks /
        # skips any rows that logically fall past the end of the array.
        return (jnp.minimum(c * inner_blocks + i, total_blocks - 1), 0)

    kernel = functools.partial(
        _mse_partial_kernel,
        rows=rows, block_rows=block_rows, inner_blocks=inner_blocks,
        need_mask=need_mask, native_sub=native_sub)

    compiler_params = pltpu.CompilerParams(
        # TODO(synk): verify via xprof on v7x that "parallel" shards the
        # leading axis across both TensorCores; use pltpu.CORE_PARALLEL if not.
        dimension_semantics=("parallel", "arbitrary"),
        vmem_limit_bytes=vmem_limit)

    partials = pl.pallas_call(
        kernel,
        out_shape=jax.ShapeDtypeStruct((num_parts * _SUBLANE, _LANE),
                                       jnp.float32),
        grid_spec=pltpu.PrefetchScalarGridSpec(
            num_scalar_prefetch=0,
            grid=(num_parts, inner_blocks),
            in_specs=[
                pl.BlockSpec((block_rows, _LANE), in_index_map),
                pl.BlockSpec((block_rows, _LANE), in_index_map),
            ],
            # One lane-dense (8,128) partial-sum block per part, resident in
            # VMEM across the whole inner (reduction) axis.
            out_specs=pl.BlockSpec((_SUBLANE, _LANE), lambda c, i: (c, 0)),
        ),
        compiler_params=compiler_params,
        cost_estimate=pl.CostEstimate(
            flops=3 * rows * _LANE,
            transcendentals=0,
            bytes_accessed=2 * rows * _LANE * itemsize),
    )(x2, y2)

    total = jnp.sum(partials, dtype=jnp.float32) + tail_sq_sum
    return total * jnp.float32(scale)


if __name__ == "__main__":
    key = jax.random.PRNGKey(0)
    k1, k2 = jax.random.split(key)

    shape = (2, 4, 16, 16)  # [N, C, H, W], small synthetic inputs
    x = {"complex": jax.random.normal(k1, shape, dtype=jnp.float32)}
    y = {"complex": jax.random.normal(k2, shape, dtype=jnp.float32)}

    weight = 1.0
    loss = complex_loss(x["complex"], y["complex"], weight=weight)
    loss = jax.block_until_ready(loss)

    # Pure-JAX reference for correctness.
    ref = jnp.mean((x["complex"] - y["complex"]) ** 2) * 2.0 * weight
    assert jnp.allclose(loss, ref, rtol=1e-5, atol=1e-6), (loss, ref)

    print("KERNEL_OK")
</pallas_src>

<mosaic_0001>
module attributes {stable_mosaic.version = 11 : i64} {
  func.func @_mse_partial_kernel(%arg0: i32, %arg1: i32, %arg2: memref<16x128xf32, #tpu.memory_space<vmem>>, %arg3: memref<16x128xf32, #tpu.memory_space<vmem>>, %arg4: memref<8x128xf32, #tpu.memory_space<vmem>>) attributes {dimension_semantics = [#tpu.dimension_semantics<parallel>, #tpu.dimension_semantics<arbitrary>], iteration_bounds = array<i64: 1, 1>, scalar_prefetch = 0 : i64, scratch_operands = 0 : i64, tpu.core_type = #tpu.core_type<tc>, window_params = [{transform_indices = @transform_0, window_bounds = array<i64: 16, 128>}, {transform_indices = @transform_1, window_bounds = array<i64: 16, 128>}, {transform_indices = @transform_2, window_bounds = array<i64: 8, 128>}]} {
    %c0_i32 = arith.constant 0 : i32
    %0 = arith.cmpi eq, %arg1, %c0_i32 : i32
    %1 = arith.extui %0 : i1 to i32
    %c0_i32_0 = arith.constant 0 : i32
    %2 = arith.cmpi ne, %1, %c0_i32_0 : i32
    scf.if %2 {
      %cst_8 = arith.constant 0.000000e+00 : f32
      %12 = vector.broadcast %cst_8 : f32 to vector<8x128xf32>
      %c0_9 = arith.constant 0 : index
      %c0_10 = arith.constant 0 : index
      %13 = vector.load %arg4[%c0_9, %c0_10] : memref<8x128xf32, #tpu.memory_space<vmem>>, vector<8x128xf32>
      tpu.vector_store %arg4[%c0_9, %c0_10], %12 {strides = array<i32>} : memref<8x128xf32, #tpu.memory_space<vmem>>, vector<8x128xf32>,
    } else {
    }
    %c0 = arith.constant 0 : index
    %c0_1 = arith.constant 0 : index
    %3 = vector.load %arg2[%c0, %c0_1] : memref<16x128xf32, #tpu.memory_space<vmem>>, vector<16x128xf32>
    %c0_2 = arith.constant 0 : index
    %c0_3 = arith.constant 0 : index
    %4 = vector.load %arg3[%c0_2, %c0_3] : memref<16x128xf32, #tpu.memory_space<vmem>>, vector<16x128xf32>
    %5 = arith.subf %3, %4 : vector<16x128xf32>
    %6 = arith.mulf %5, %5 : vector<16x128xf32>
    %c0_4 = arith.constant 0 : index
    %c0_5 = arith.constant 0 : index
    %7 = vector.load %arg4[%c0_4, %c0_5] : memref<8x128xf32, #tpu.memory_space<vmem>>, vector<8x128xf32>
    %8 = vector.shape_cast %6 : vector<16x128xf32> to vector<2x8x128xf32>
    %cst = arith.constant dense<0.000000e+00> : vector<8x128xf32>
    %9 = vector.multi_reduction <add>, %8, %cst [0] : vector<2x8x128xf32> to vector<8x128xf32>
    %10 = arith.addf %7, %9 : vector<8x128xf32>
    %c0_6 = arith.constant 0 : index
    %c0_7 = arith.constant 0 : index
    %11 = vector.load %arg4[%c0_6, %c0_7] : memref<8x128xf32, #tpu.memory_space<vmem>>, vector<8x128xf32>
    tpu.vector_store %arg4[%c0_6, %c0_7], %10 {strides = array<i32>} : memref<8x128xf32, #tpu.memory_space<vmem>>, vector<8x128xf32>,
    return
  }
  func.func @transform_0(%arg0: i32, %arg1: i32) -> (i32, i32) {
    %c1_i32 = arith.constant 1 : i32
    %0 = arith.muli %arg0, %c1_i32 : i32
    %1 = arith.addi %0, %arg1 : i32
    %c0_i32 = arith.constant 0 : i32
    %2 = arith.minsi %1, %c0_i32 : i32
    %c0_i32_0 = arith.constant 0 : i32
    %c0_i32_1 = arith.constant 0 : i32
    return %2, %c0_i32_0 : i32, i32
  }
  func.func @transform_1(%arg0: i32, %arg1: i32) -> (i32, i32) {
    %c1_i32 = arith.constant 1 : i32
    %0 = arith.muli %arg0, %c1_i32 : i32
    %1 = arith.addi %0, %arg1 : i32
    %c0_i32 = arith.constant 0 : i32
    %2 = arith.minsi %1, %c0_i32 : i32
    %c0_i32_0 = arith.constant 0 : i32
    %c0_i32_1 = arith.constant 0 : i32
    return %2, %c0_i32_0 : i32, i32
  }
  func.func @transform_2(%arg0: i32, %arg1: i32) -> (i32, i32) {
    %c0_i32 = arith.constant 0 : i32
    %c0_i32_0 = arith.constant 0 : i32
    return %arg0, %c0_i32 : i32, i32
  }
}

</mosaic_0001>

<llo_original>
// kernel: tpu_custom_call.1
$region0: #{tpu_custom_call.1}
  #allocation0 [shape = 'u32[]', space=smem, size = 0x4, offset = 0x4, fixed_abs, tag = 'smem constant byte address 0x4 - core index']
  #allocation1 [shape = 'u32[144,128]{1,0:T(1,128)}', space=vmem, size = 0x12000, scoped, tag = 'internal scratch']
  %s0 = inlined_call_operand.hbm [shape: f32[16,128], index: 0, kind: input, shape index: {}]
  %s1 = inlined_call_operand.hbm [shape: f32[16,128], index: 1, kind: input, shape index: {}]
  %s2 = inlined_call_operand.hbm [shape: f32[8,128], index: 2, kind: output, shape index: {}]
  %s3 = sld [smem:[#allocation0]]
  $region30: #{tpu_custom_call.1} parent=0
    _
  %s5 = ssub.s32 1, %s3
  %s6 = scalar_select 0, %s5, %s3
  $region1: #{tpu_custom_call.1} parent=0
    #allocation2 [shape = 'u8[8192]{0}', space=vmem, size = 0x2000, scoped, tag = 'input window, operand 0, single buffered']
    #allocation3 [shape = 's32[1]{0}', space=sflag, size = 0x4, scoped, tag = 'scoped memory for tpu_custom_call.1']
    #allocation4 [shape = 's32[1]{0}', space=sflag, size = 0x4, scoped, tag = 'scoped memory for tpu_custom_call.1']
    #allocation5 [shape = 'u8[8192]{0}', space=vmem, size = 0x2000, scoped, tag = 'input window, operand 1, single buffered']
    #allocation6 [shape = 's32[1]{0}', space=sflag, size = 0x4, scoped, tag = 'scoped memory for tpu_custom_call.1']
    #allocation7 [shape = 'u8[4096]{0}', space=vmem, size = 0x1000, scoped, tag = 'output window, operand 0, single buffered']
    %7 = vsyncpa [#allocation3], 0
    %8 = vsyncpa [#allocation6], 0
    %9 = vsyncpa [#allocation4], 0
    // Predicated region
    $region2: #{tpu_custom_call.1} parent=1 // pred_check
      _
    $region3: #{tpu_custom_call.1} parent=1 // pred_check_branch
      %11 = sbr.rel (0) target = $region5
    $region4: #{tpu_custom_call.1} parent=1 // pred_region
      %s12 = sadd.s32 0, 0
      %p13 = scmp.lt.s32.totalorder %s12, 0
      %s14 = scalar_select %p13, %s12, 0
      %s15 = smul.u32 2, %s14
      %s17 = ssub.s32 256, 256
      %18 = vsyncadd [#allocation3], %s17
      %s19 = smul.addr %s15, 128
      %s20 = scalar_lea.hbm %s0, %s19
      %s21 = sshll.u32 [#allocation2], 4
      %s22 = int_to_ptr.vmem [resolvable:$true] %s21
      %27 = dma.hbm_to_vmem [thread:$0]  %s20, 256, %s22, [#allocation3], 128, 128, 8
    $region5: #{tpu_custom_call.1} parent=1 // pred_fallthru
      _
    // Predicated region
    $region6: #{tpu_custom_call.1} parent=1 // pred_check
      _
    $region7: #{tpu_custom_call.1} parent=1 // pred_check_branch
      %29 = sbr.rel (0) target = $region9
    $region8: #{tpu_custom_call.1} parent=1 // pred_region
      %s30 = sadd.s32 0, 0
      %p31 = scmp.lt.s32.totalorder %s30, 0
      %s32 = scalar_select %p31, %s30, 0
      %s33 = smul.u32 2, %s32
      %s35 = ssub.s32 256, 256
      %36 = vsyncadd [#allocation6], %s35
      %s37 = smul.addr %s33, 128
      %s38 = scalar_lea.hbm %s1, %s37
      %s39 = sshll.u32 [#allocation5], 4
      %s40 = int_to_ptr.vmem [resolvable:$true] %s39
      %45 = dma.hbm_to_vmem [thread:$0]  %s38, 256, %s40, [#allocation6], 128, 128, 8
    $region9: #{tpu_custom_call.1} parent=1 // pred_fallthru
      _
    // Predicated region
    $region10: #{tpu_custom_call.1} parent=1 // pred_check
      _
    $region11: #{tpu_custom_call.1} parent=1 // pred_check_branch
      %47 = sbr.rel (0) target = $region13
    $region12: #{tpu_custom_call.1} parent=1 // pred_region
      %48 = dma.done [#allocation3], 256
    $region13: #{tpu_custom_call.1} parent=1 // pred_fallthru
      _
    // Predicated region
    $region14: #{tpu_custom_call.1} parent=1 // pred_check
      _
    $region15: #{tpu_custom_call.1} parent=1 // pred_check_branch
      %50 = sbr.rel (0) target = $region17
    $region16: #{tpu_custom_call.1} parent=1 // pred_region
      %51 = dma.done [#allocation6], 256
    $region17: #{tpu_custom_call.1} parent=1 // pred_fallthru
      _
    %s52 = sadd.s32 0, 0
    %p53 = scmp.lt.s32.totalorder %s52, 0
    %s54 = scalar_select %p53, %s52, 0
    %s55 = smul.u32 2, %s54
    %s56 = sadd.s32 0, 0
    %p57 = scmp.lt.s32.totalorder %s56, 0
    %s58 = scalar_select %p57, %s56, 0
    %s59 = smul.u32 2, %s58
    %p60 = scmp.eq.s32.totalorder 0, 0
    // Predicated region
    $region18: #{tpu_custom_call.1} parent=1 // pred_check
      %p61 = pneg %p60
    $region19: #{tpu_custom_call.1} parent=1 // pred_check_branch
      %63 = sbr.rel (%p61) target = $region21
    $region20: #{tpu_custom_call.1} parent=1 // pred_region
      %64 = vst [vmem:[#allocation7] sm:$0xff] 0.0
    $region21: #{tpu_custom_call.1} parent=1 // pred_fallthru
      _
    %v65 = vld [vmem:[#allocation2] sm:$0xff]
    %v66 = vld [vmem:[#allocation2 + $0x8] sm:$0xff]
    %v67 = vld [vmem:[#allocation5] sm:$0xff]
    %v68 = vld [vmem:[#allocation5 + $0x8] sm:$0xff]
    %v69 = vsub.f32 %v65, %v67
    %v70 = vsub.f32 %v66, %v68
    %v71 = vmul.f32 %v69, %v69
    %v72 = vmul.f32 %v70, %v70
    %v73 = vld [vmem:[#allocation7] sm:$0xff]
    %v74 = vadd.f32 %v71, %v72
    %v75 = vadd.f32 %v73, %v74
    %76 = vst [vmem:[#allocation7] sm:$0xff] %v75
    // Predicated region
    $region22: #{tpu_custom_call.1} parent=1 // pred_check
      _
    $region23: #{tpu_custom_call.1} parent=1 // pred_check_branch
      %78 = sbr.rel (0) target = $region25
    $region24: #{tpu_custom_call.1} parent=1 // pred_region
      %s80 = ssub.s32 128, 128
      %81 = vsyncadd [#allocation4], %s80
      %s83 = sshll.u32 [#allocation7], 4
      %s84 = int_to_ptr.vmem [resolvable:$true] %s83
      %86 = dma.vmem_to_hbm [thread:$0]  %s84, 128, %s2, [#allocation4]
    $region25: #{tpu_custom_call.1} parent=1 // pred_fallthru
      _
    // Predicated region
    $region26: #{tpu_custom_call.1} parent=1 // pred_check
      _
    $region27: #{tpu_custom_call.1} parent=1 // pred_check_branch
      %88 = sbr.rel (0) target = $region29
    $region28: #{tpu_custom_call.1} parent=1 // pred_region
      %89 = dma.done [#allocation4], 128
    $region29: #{tpu_custom_call.1} parent=1 // pred_fallthru
      _
    %90 = vsyncpa [#allocation3], 1
    %91 = vsyncpa [#allocation6], 1
    %92 = vsyncpa [#allocation4], 1

</llo_original>
